<compile_context>
chip_gen: v6e
topology: v6e:2x2x1
jax: 0.10.0
libtpu: 0.0.40
codegen_flags: <defaults>
</compile_context>

<pallas_src>
import numpy as np
import jax
import jax.numpy as jnp
from jax.experimental import pallas as pl
from jax.experimental.pallas import tpu as pltpu


def _round_up(x, m):
    return (x + m - 1) // m * m


def _time_encode_kernel(t_ref, w_ref, b_ref, o_ref):
    # t_ref: (TM, K)   w_ref: (1, K*D)   b_ref: (1, K*D)   o_ref: (TM, K*D)
    tm, k = t_ref.shape
    lane_dim = o_ref.shape[-1]
    dim = lane_dim // k
    t = t_ref[...]
    w = w_ref[...]
    b = b_ref[...]
    if k == 1:
        tb = jnp.broadcast_to(t, (tm, lane_dim))
    else:
        # Replicate each packed timestamp across its `dim` lanes and lay the
        # k groups side by side -> one lane-dense (TM, K*D) operand.  The cos
        # polynomial on the VALU dominates this XLU-side layout work.
        # TODO(synk): verify a single broadcast_to((tm,k,dim)).reshape relayout
        # lowers cleanly and replaces the k broadcasts + concatenate.
        parts = [jnp.broadcast_to(t[:, j:j + 1], (tm, dim)) for j in range(k)]
        tb = jnp.concatenate(parts, axis=-1)
    o_ref[...] = jnp.cos(tb * w + b).astype(o_ref.dtype)


def time_encode(t, w, b, *, out_dtype=jnp.float32):
    """t: [batch, seq], w: [dimension], b: [dimension]
       -> [batch, seq, dimension], matching torch.cos(Linear(1->dim)(t[..., None])).

    out_dtype=jnp.bfloat16 halves HBM writeback if the consumer tolerates it.
    Note: for very large timestamps (unix-epoch scale with w near 1) f32 cos
    range reduction loses precision; this matches float32 torch behavior.
    """
    batch, seq = t.shape
    dim = int(w.shape[0])
    rows = batch * seq

    # ---- lane packing ------------------------------------------------------
    # Pack k timestamps per lane-row only when it needs no row padding, so the
    # result reinterprets back to (rows, dim) with a free contiguous reshape
    # (no post-kernel slice -> no extra HBM copy of the output).
    k = 1
    if dim < 128 and (128 % dim) == 0 and rows % (128 // dim) == 0:
        k = 128 // dim
    # TODO(synk): dims that neither divide nor are multiples of 128 fall back
    # to masked (partial-lane) stores; padding dim up to 128 would waste HBM.
    lane_dim = k * dim
    rows_p = rows // k                                  # exact by construction

    # ---- row tiling ----------------------------------------------------------
    out_itemsize = jnp.dtype(out_dtype).itemsize
    sub = 16 if out_itemsize < 4 else 8                 # bf16 packs 16 sublanes
    # VMEM budget: the (tm, k) f32 input block is lane-padded to 128 in VMEM
    # regardless of k; input + output are double-buffered.  Stay well under the
    # 32 MiB scoped limit (v7x only has 64 MiB physical VMEM).
    vmem_budget = 20 * 1024 * 1024
    bytes_per_row = 2 * (128 * 4 + lane_dim * out_itemsize)
    tm_cap = max(sub, (vmem_budget // bytes_per_row) // sub * sub)
    tm = min(8192, tm_cap)

    if tm >= rows_p:
        # Single full-extent block (block dims equal to full array dims are
        # always legal); no forced split -> no extra grid-step overhead on
        # single-TensorCore chips for small inputs.
        tm, num_tiles = rows_p, 1
    else:
        num_tiles = pl.cdiv(rows_p, tm)
        if num_tiles > 1 and num_tiles % 2:
            # Even split across the two v7x TensorCores, rebalanced so the
            # extra tile is real work rather than tail imbalance.
            num_tiles += 1
            tm = _round_up(pl.cdiv(rows_p, num_tiles), sub)
            num_tiles = pl.cdiv(rows_p, tm)

    # ---- inputs (no padding anywhere) ----------------------------------------
    t2 = jnp.reshape(t.astype(jnp.float32), (rows_p, k))
    w2 = jnp.tile(jnp.reshape(w.astype(jnp.float32), (1, dim)), (1, k))  # (1, K*D)
    b2 = jnp.tile(jnp.reshape(b.astype(jnp.float32), (1, dim)), (1, k))  # (1, K*D)

    out2 = pl.pallas_call(
        _time_encode_kernel,
        out_shape=jax.ShapeDtypeStruct((rows_p, lane_dim), out_dtype),
        grid_spec=pltpu.PrefetchScalarGridSpec(
            num_scalar_prefetch=0,
            grid=(num_tiles,),
            in_specs=[
                pl.BlockSpec((tm, k), lambda i: (i, 0)),        # timestamps tile
                pl.BlockSpec((1, lane_dim), lambda i: (0, 0)),  # weights, resident
                pl.BlockSpec((1, lane_dim), lambda i: (0, 0)),  # bias, resident
            ],
            out_specs=pl.BlockSpec((tm, lane_dim), lambda i: (i, 0)),
        ),
        compiler_params=pltpu.CompilerParams(
            dimension_semantics=("parallel",),
            vmem_limit_bytes=32 * 1024 * 1024,
        ),
    )(t2, w2, b2)

    # Contiguous (free) reinterpret: (rows_p, k*dim) == (rows, dim) elementwise
    # in row-major order; no slice, no copy.
    return out2.reshape(batch, seq, dim)


if __name__ == "__main__":
    batch, seq, dimension = 2, 8, 32

    # Deterministic parameter init, mirroring TimeEncode.__init__
    w_np = (1.0 / 10 ** np.linspace(0, 9, dimension)).astype(np.float32)  # [dimension]
    b_np = np.zeros((dimension,), dtype=np.float32)
    w = jnp.asarray(w_np)
    b = jnp.asarray(b_np)

    # Deterministic example input (timestamps)
    key = jax.random.PRNGKey(0)
    t = jax.random.uniform(key, (batch, seq), dtype=jnp.float32) * 100.0

    out = time_encode(t, w, b)
    out = jax.block_until_ready(out)

    # Reference check (plain JAX, same math as the torch module)
    ref = jnp.cos(t[..., None] * w[None, None, :] + b[None, None, :])
    assert out.shape == (batch, seq, dimension)
    np.testing.assert_allclose(np.asarray(out), np.asarray(ref), rtol=1e-5, atol=1e-5)

    print("KERNEL_OK")
</pallas_src>

<mosaic_0001>
module attributes {stable_mosaic.version = 11 : i64} {
  func.func @_time_encode_kernel(%arg0: i32, %arg1: memref<4x4xf32, #tpu.memory_space<vmem>>, %arg2: memref<1x128xf32, #tpu.memory_space<vmem>>, %arg3: memref<1x128xf32, #tpu.memory_space<vmem>>, %arg4: memref<4x128xf32, #tpu.memory_space<vmem>>) attributes {dimension_semantics = [#tpu.dimension_semantics<parallel>], iteration_bounds = array<i64: 1>, scalar_prefetch = 0 : i64, scratch_operands = 0 : i64, tpu.core_type = #tpu.core_type<tc>, window_params = [{transform_indices = @transform_0, window_bounds = array<i64: 4, 4>}, {pipeline_mode = #tpu.pipeline_mode<synchronous>, transform_indices = @transform_1, window_bounds = array<i64: 1, 128>}, {pipeline_mode = #tpu.pipeline_mode<synchronous>, transform_indices = @transform_2, window_bounds = array<i64: 1, 128>}, {transform_indices = @transform_3, window_bounds = array<i64: 4, 128>}]} {
    %c0 = arith.constant 0 : index
    %c0_0 = arith.constant 0 : index
    %0 = vector.load %arg1[%c0, %c0_0] : memref<4x4xf32, #tpu.memory_space<vmem>>, vector<4x4xf32>
    %c0_1 = arith.constant 0 : index
    %c0_2 = arith.constant 0 : index
    %1 = vector.load %arg2[%c0_1, %c0_2] : memref<1x128xf32, #tpu.memory_space<vmem>>, vector<1x128xf32>
    %c0_3 = arith.constant 0 : index
    %c0_4 = arith.constant 0 : index
    %2 = vector.load %arg3[%c0_3, %c0_4] : memref<1x128xf32, #tpu.memory_space<vmem>>, vector<1x128xf32>
    %3 = vector.extract_strided_slice %0 {offsets = [0, 0], sizes = [4, 1], strides = [1, 1]} : vector<4x4xf32> to vector<4x1xf32>
    %4 = vector.shape_cast %3 : vector<4x1xf32> to vector<4x1xf32>
    %5 = vector.broadcast %4 : vector<4x1xf32> to vector<4x32xf32>
    %6 = vector.extract_strided_slice %0 {offsets = [0, 1], sizes = [4, 1], strides = [1, 1]} : vector<4x4xf32> to vector<4x1xf32>
    %7 = vector.shape_cast %6 : vector<4x1xf32> to vector<4x1xf32>
    %8 = vector.broadcast %7 : vector<4x1xf32> to vector<4x32xf32>
    %9 = vector.extract_strided_slice %0 {offsets = [0, 2], sizes = [4, 1], strides = [1, 1]} : vector<4x4xf32> to vector<4x1xf32>
    %10 = vector.shape_cast %9 : vector<4x1xf32> to vector<4x1xf32>
    %11 = vector.broadcast %10 : vector<4x1xf32> to vector<4x32xf32>
    %12 = vector.extract_strided_slice %0 {offsets = [0, 3], sizes = [4, 1], strides = [1, 1]} : vector<4x4xf32> to vector<4x1xf32>
    %13 = vector.shape_cast %12 : vector<4x1xf32> to vector<4x1xf32>
    %14 = vector.broadcast %13 : vector<4x1xf32> to vector<4x32xf32>
    %15 = tpu.concatenate %5, %8, %11, %14 in 1 : vector<4x32xf32>, vector<4x32xf32>, vector<4x32xf32>, vector<4x32xf32> -> vector<4x128xf32>
    %16 = vector.broadcast %1 : vector<1x128xf32> to vector<4x128xf32>
    %17 = arith.mulf %15, %16 : vector<4x128xf32>
    %18 = vector.broadcast %2 : vector<1x128xf32> to vector<4x128xf32>
    %19 = arith.addf %17, %18 : vector<4x128xf32>
    %20 = math.cos %19 : vector<4x128xf32>
    %c0_5 = arith.constant 0 : index
    %c0_6 = arith.constant 0 : index
    %21 = vector.load %arg4[%c0_5, %c0_6] : memref<4x128xf32, #tpu.memory_space<vmem>>, vector<4x128xf32>
    tpu.vector_store %arg4[%c0_5, %c0_6], %20 {strides = array<i32>} : memref<4x128xf32, #tpu.memory_space<vmem>>, vector<4x128xf32>,
    return
  }
  func.func @transform_0(%arg0: i32) -> (i32, i32) {
    %c0_i32 = arith.constant 0 : i32
    %c0_i32_0 = arith.constant 0 : i32
    return %arg0, %c0_i32 : i32, i32
  }
  func.func @transform_1(%arg0: i32) -> (i32, i32) {
    %c0_i32 = arith.constant 0 : i32
    %c0_i32_0 = arith.constant 0 : i32
    %c0_i32_1 = arith.constant 0 : i32
    return %c0_i32, %c0_i32_0 : i32, i32
  }
  func.func @transform_2(%arg0: i32) -> (i32, i32) {
    %c0_i32 = arith.constant 0 : i32
    %c0_i32_0 = arith.constant 0 : i32
    %c0_i32_1 = arith.constant 0 : i32
    return %c0_i32, %c0_i32_0 : i32, i32
  }
  func.func @transform_3(%arg0: i32) -> (i32, i32) {
    %c0_i32 = arith.constant 0 : i32
    %c0_i32_0 = arith.constant 0 : i32
    return %arg0, %c0_i32 : i32, i32
  }
}

</mosaic_0001>

<llo_original>
// kernel: tpu_custom_call.1
$region0: #{tpu_custom_call.1}
  #allocation0 [shape = 'u32[]', space=smem, size = 0x4, offset = 0x4, fixed_abs, tag = 'smem constant byte address 0x4 - core index']
  #allocation1 [shape = 'u32[144,128]{1,0:T(1,128)}', space=vmem, size = 0x12000, scoped, tag = 'internal scratch']
  %s0 = inlined_call_operand.hbm [shape: f32[4,4], index: 0, kind: input, shape index: {}]
  %s1 = inlined_call_operand.vmem [shape: f32[1,128], index: 1, kind: input, shape index: {}]
  %s2 = inlined_call_operand.vmem [shape: f32[1,128], index: 2, kind: input, shape index: {}]
  %s3 = inlined_call_operand.hbm [shape: f32[4,128], index: 3, kind: output, shape index: {}]
  %s4 = sld [smem:[#allocation0]]
  $region26: #{tpu_custom_call.1} parent=0
    _
  %s6 = ssub.s32 1, %s4
  %s7 = scalar_select 0, %s6, %s4
  $region1: #{tpu_custom_call.1} parent=0
    #allocation2 [shape = 'u8[2048]{0}', space=vmem, size = 0x800, scoped, tag = 'input window, operand 0, single buffered']
    #allocation3 [shape = 's32[1]{0}', space=sflag, size = 0x4, scoped, tag = 'scoped memory for tpu_custom_call.1']
    #allocation4 [shape = 's32[1]{0}', space=sflag, size = 0x4, scoped, tag = 'scoped memory for tpu_custom_call.1']
    #allocation5 [shape = 'u8[2048]{0}', space=vmem, size = 0x800, scoped, tag = 'output window, operand 0, single buffered']
    %8 = vsyncpa [#allocation3], 0
    %9 = vsyncpa [#allocation4], 0
    // Predicated region
    $region2: #{tpu_custom_call.1} parent=1 // pred_check
      _
    $region3: #{tpu_custom_call.1} parent=1 // pred_check_branch
      %11 = sbr.rel (0) target = $region5
    $region4: #{tpu_custom_call.1} parent=1 // pred_region
      %s13 = ssub.s32 64, 64
      %14 = vsyncadd [#allocation3], %s13
      %s16 = sshll.u32 [#allocation2], 4
      %s17 = int_to_ptr.vmem [resolvable:$true] %s16
      %19 = dma.hbm_to_vmem [thread:$0]  %s0, 64, %s17, [#allocation3]
    $region5: #{tpu_custom_call.1} parent=1 // pred_fallthru
      _
    // Predicated region
    $region6: #{tpu_custom_call.1} parent=1 // pred_check
      _
    $region7: #{tpu_custom_call.1} parent=1 // pred_check_branch
      %21 = sbr.rel (0) target = $region9
    $region8: #{tpu_custom_call.1} parent=1 // pred_region
      _
    $region9: #{tpu_custom_call.1} parent=1 // pred_fallthru
      _
    // Predicated region
    $region10: #{tpu_custom_call.1} parent=1 // pred_check
      _
    $region11: #{tpu_custom_call.1} parent=1 // pred_check_branch
      %23 = sbr.rel (0) target = $region13
    $region12: #{tpu_custom_call.1} parent=1 // pred_region
      _
    $region13: #{tpu_custom_call.1} parent=1 // pred_fallthru
      _
    // Predicated region
    $region14: #{tpu_custom_call.1} parent=1 // pred_check
      _
    $region15: #{tpu_custom_call.1} parent=1 // pred_check_branch
      %25 = sbr.rel (0) target = $region17
    $region16: #{tpu_custom_call.1} parent=1 // pred_region
      %26 = dma.done [#allocation3], 64
    $region17: #{tpu_custom_call.1} parent=1 // pred_fallthru
      _
    %v27 = vld [vmem:[#allocation2] sm:$0xf]
    %v28 = vld [vmem:[%s1] sm:$0x1]
    %v29 = vld [vmem:[%s2] sm:$0x1]
    %31 = vset.pattern.permute.xlu0 0
    %32 = vperm.xlu0 %31, %v27
    %v33 = vpop.permute.xlu0 %32
    %35 = vset.pattern.permute.xlu0 1
    %36 = vperm.xlu0 %35, %v27
    %v37 = vpop.permute.xlu0 %36
    %39 = vset.pattern.permute.xlu0 2
    %40 = vperm.xlu0 %39, %v27
    %v41 = vpop.permute.xlu0 %40
    %43 = vset.pattern.permute.xlu0 3
    %44 = vperm.xlu0 %43, %v27
    %v45 = vpop.permute.xlu0 %44
    %vm47 = vcmask 261120
    %v48 = vsel %vm47, %v33, %v37
    %vm49 = vcmask 523264
    %v50 = vsel %vm49, %v48, %v41
    %vm51 = vcmask 785408
    %v52 = vsel %vm51, %v50, %v45
    %v54 = vlaneseq
    %v55 = vshrl.u32 %v54, 7
    %v56 = vsub.s32 0, %v55
    %v57 = vrot.slane %v28, %v56
    %v59 = vmul.f32 %v52, %v57
    %v61 = vlaneseq
    %v62 = vshrl.u32 %v61, 7
    %v63 = vsub.s32 0, %v62
    %v64 = vrot.slane %v29, %v63
    %v66 = vadd.f32 %v59, %v64
    %v67 = vand.u32 2147483647, %v66
    %vm68 = vcmp.le.f32.partialorder %v67, 0.7853982
    %vm69 = vcmp.lt.s32.totalorder %v66, 0
    %v70 = vand.u32 %v66, 2139095040
    %v71 = vshrl.u32 %v70, 23
    %v72 = vsub.s32 %v71, 127
    %v73 = vand.u32 2147483647, %v66
    %v74 = vand.u32 %v73, 8388607
    %v75 = vor.u32 %v74, 8388608
    %v76 = vsub.s32 0, %v75
    %v77 = vadd.s32 %v72, 1
    %vm78 = vcmp.gt.s32.totalorder %v77, 0
    %v79 = vsel %vm78, %v77, 0
    %v80 = vshrl.u32 %v79, 5
    %v81 = vand.u32 %v79, 31
    %v82 = vsub.s32 32, %v81
    %v83 = vshrl.u32 683565275, %v82
    %v84 = vshll.u32 683565275, %v81
    %v85 = vshrl.u32 2475754826, %v82
    %v86 = vor.u32 %v84, %v85
    %v87 = vshll.u32 2475754826, %v81
    %v88 = vshrl.u32 2131351028, %v82
    %v89 = vor.u32 %v87, %v88
    %v90 = vshll.u32 2131351028, %v81
    %v91 = vshrl.u32 2102212464, %v82
    %v92 = vor.u32 %v90, %v91
    %v93 = vshll.u32 2102212464, %v81
    %v94 = vshrl.u32 920167782, %v82
    %v95 = vor.u32 %v93, %v94
    %v96 = vshll.u32 920167782, %v81
    %v97 = vshrl.u32 1326507024, %v82
    %v98 = vor.u32 %v96, %v97
    %vm99 = vcmp.lt.s32.totalorder %v80, 1
    %vm100 = vcmp.lt.s32.totalorder %v80, 2
    %vm101 = vcmp.lt.s32.totalorder %v80, 3
    %vm102 = vcmp.lt.s32.totalorder %v80, 4
    %v103 = vsel %vm99, %v83, %v86
    %v104 = vsel %vm102, %v92, 2102212464
    %v105 = vsel %vm101, %v89, %v104
    %v106 = vsel %vm100, %v103, %v105
    %v107 = vsel %vm99, %v86, %v89
    %v108 = vsel %vm102, %v95, 920167782
    %v109 = vsel %vm101, %v92, %v108
    %v110 = vsel %vm100, %v107, %v109
    %v111 = vsel %vm99, %v89, %v92
    %v112 = vsel %vm102, %v98, 1326507024
    %v113 = vsel %vm101, %v95, %v112
    %v114 = vsel %vm100, %v111, %v113
    %v115 = vshll.u32 %v75, 8
    %v116 = vmul.u32.u64.compose %v115, %v114
    %v117 = vextract.low.u32 %v116
    %v118 = vextract.high.u32 %v116
    %v119 = vmul.u32.u64.compose %v115, %v110
    %v120 = vextract.low.u32 %v119
    %v121 = vextract.high.u32 %v119
    %v122 = vmul.u32 %v115, %v106
    %v123 = vadd.s32 %v118, %v120
    %vm124 = vc.u32 %v118, %v120
    %v125 = vadd.s32 %v121, 1
    %v126 = vsel %vm124, %v125, %v121
    %v127 = vadd.s32 %v122, %v126
    %v128 = vadd.s32 %v127, 536870912
    %v129 = vshrl.u32 %v128, 30
    %v130 = vshll.u32 %v129, 30
    %v131 = vsub.s32 %v127, %v130
    %vm132 = vcmp.lt.s32.totalorder %v131, 0
    %v133 = vsub.s32 0, %v131
    %v134 = vsel %vm132, %v133, %v131
    %v135 = vclz %v134
    %v136 = vsub.s32 %v135, 2
    %vm137 = vcmp.gt.s32.totalorder 0, %v136
    %v138 = vsel %vm137, 0, %v136
    %v139 = vsub.s32 32, %v138
    %v140 = vshll.u32 %v131, %v138
    %v141 = vshrl.u32 %v123, %v139
    %v142 = vor.u32 %v140, %v141
    %v143 = vsub.s32 4294967266, %v138
    %v144 = vadd.s32 %v143, 127
    %v145 = vshll.u32 %v144, 23
    %v146 = vor.u32 4788187, %v145
    %v147 = vand.u32 2147483647, %v146
    %v149 = vcvt.s32.f32 %v142
    %v150 = vmul.f32 %v149, %v147
    %v151 = vxor.u32 %v150, 2147483648
    %v152 = vsel %vm69, %v151, %v150
    %v153 = vsub.s32 4, %v129
    %v154 = vsel %vm69, %v153, %v129
    %v155 = vsel %vm68, %v66, %v152
    %v156 = vsel %vm68, 0, %v154
    %v157 = vcosq.f32.pop %v155
    %v158 = vsinq.f32.pop %v155
    %vm159 = vweird.f32 %v66
    %v160 = vand.u32 %v156, 3
    %vm161 = vcmp.lt.s32.totalorder %v160, 2
    %vm162 = vcmp.eq.s32.totalorder %v160, 0
    %v163 = vxor.u32 %v158, 2147483648
    %v164 = vsel %vm162, %v157, %v163
    %vm165 = vcmp.eq.s32.totalorder %v160, 2
    %v166 = vxor.u32 %v157, 2147483648
    %v167 = vsel %vm165, %v166, %v158
    %v168 = vsel %vm161, %v164, %v167
    %v169 = vsel %vm159, nan, %v168
    %170 = vst [vmem:[#allocation5] sm:$0xf] %v169
    // Predicated region
    $region18: #{tpu_custom_call.1} parent=1 // pred_check
      _
    $region19: #{tpu_custom_call.1} parent=1 // pred_check_branch
      %172 = sbr.rel (0) target = $region21
    $region20: #{tpu_custom_call.1} parent=1 // pred_region
      %s174 = ssub.s32 64, 64
      %175 = vsyncadd [#allocation4], %s174
      %s177 = sshll.u32 [#allocation5], 4
      %s178 = int_to_ptr.vmem [resolvable:$true] %s177
      %180 = dma.vmem_to_hbm [thread:$0]  %s178, 64, %s3, [#allocation4]
    $region21: #{tpu_custom_call.1} parent=1 // pred_fallthru
      _
    // Predicated region
    $region22: #{tpu_custom_call.1} parent=1 // pred_check
      _
    $region23: #{tpu_custom_call.1} parent=1 // pred_check_branch
      %182 = sbr.rel (0) target = $region25
    $region24: #{tpu_custom_call.1} parent=1 // pred_region
      %183 = dma.done [#allocation4], 64
    $region25: #{tpu_custom_call.1} parent=1 // pred_fallthru
      _
    %184 = vsyncpa [#allocation3], 1
    %185 = vsyncpa [#allocation4], 1

</llo_original>
